<compile_context>
chip_gen: v5e
topology: v5e:2x2
jax: 0.10.0
libtpu: 0.0.40
codegen_flags: <defaults>
</compile_context>

<pallas_src>
import functools

import jax
import jax.numpy as jnp
from jax.experimental import pallas as pl
from jax.experimental.pallas import tpu as pltpu


def _sts_gcm_kernel(adj_ref, data_ref, wl_ref, wr_ref, bl_ref, br_ref,
                    vals_ref, idx_ref, *, L, Cp):
    """One (row_tile, batch) grid step.

    adj_ref : (R, 3N)      middle-window rows of adj for this row tile
    data_ref: (3N, C)      original data for the current batch element
    wl_ref  : (C, L*Cp)    gate halves of all layers' Linear weights (transposed)
    wr_ref  : (C, L*Cp)    value (sigmoid) halves
    bl_ref  : (1, L*Cp)    gate biases
    br_ref  : (1, L*Cp)    value biases
    vals_ref/idx_ref: (R, Cp)
    """
    # Stage 1 (MXU): graph aggregation; the intermediate never leaves VMEM/vregs.
    mid = jnp.dot(adj_ref[...], data_ref[...],
                  preferred_element_type=jnp.float32)                 # (R, C)

    # Stage 2 (MXU): all L layers in two lane-dense matmuls (gate / value halves),
    # so the GLU split needs no sub-128 lane slicing of the matmul result.
    gate = jnp.dot(mid, wl_ref[...],
                   preferred_element_type=jnp.float32) + bl_ref[...]  # (R, L*Cp)
    val = jnp.dot(mid, wr_ref[...],
                  preferred_element_type=jnp.float32) + br_ref[...]   # (R, L*Cp)

    # GLU once: one EUP sigmoid burst + one VPU mul over all layers.
    g = gate * jax.nn.sigmoid(val)                                    # (R, L*Cp)

    # torch.max(dim=0) over layers: strict '>' keeps the earliest layer on ties.
    vals = g[:, :Cp]
    idx = jnp.zeros(vals.shape, jnp.int32)
    for l in range(1, L):
        gl = g[:, l * Cp:(l + 1) * Cp]
        take = gl > vals
        vals = jnp.where(take, gl, vals)
        idx = jnp.where(take, jnp.int32(l), idx)

    vals_ref[...] = vals
    idx_ref[...] = idx


@functools.partial(jax.jit, static_argnames=("window_size", "N"))
def sts_gcm_forward(data, adj, w_t, b, *, window_size, N):
    """data: (3N, B, C), adj: (3N, 3N), w_t: (L, C, 2C'), b: (L, 2C').

    Returns (values, indices) of shape (N, B, C'), matching torch.max(cat, dim=0)
    (indices are int32 instead of torch's int64).
    """
    TN, batch, C = data.shape
    L, _, two_cp = w_t.shape
    Cp = two_cp // 2
    LCp = L * Cp
    lo = (window_size - 1) // 2 * N

    # Batch-major data so the per-batch slab is a pure BlockSpec slice.
    data_b = jnp.transpose(data, (1, 0, 2))                           # (B, 3N, C)

    # Gate/value-split weight layout: columns = [layer0 .. layerL-1] per half.
    w_lhs = jnp.transpose(w_t[:, :, :Cp], (1, 0, 2)).reshape(C, LCp)  # (C, L*Cp)
    w_rhs = jnp.transpose(w_t[:, :, Cp:], (1, 0, 2)).reshape(C, LCp)
    b_lhs = b[:, :Cp].reshape(1, LCp)
    b_rhs = b[:, Cp:].reshape(1, LCp)

    if N % 8 == 0:
        # Select the middle-window rows of adj purely via the index_map (no host
        # copy).  Prefer a tile giving >= 2 row blocks so megacore can split rows.
        candidates = (512, 256, 128, 64, 32, 16, 8)
        row_tile = next((t for t in candidates if N % t == 0 and N // t >= 2), None)
        if row_tile is None:
            row_tile = next(t for t in candidates if N % t == 0)
        adj_in = adj
        assert lo % row_tile == 0        # holds: row_tile | N and lo = k * N
        row_blk = lo // row_tile
    else:
        # Irregular N: host-side row slice (full-array block).
        # TODO(synk): pad N up to a multiple of 8 instead to keep the zero-copy path.
        row_tile = N
        adj_in = jax.lax.dynamic_slice_in_dim(adj, lo, N, axis=0)
        row_blk = 0

    grid = (N // row_tile, batch)
    kernel = functools.partial(_sts_gcm_kernel, L=L, Cp=Cp)

    # Advisory cost estimate so XLA overlaps the wrapper-side transposes.
    flops = 2 * N * batch * TN * C + 4 * N * batch * C * LCp
    transc = N * batch * LCp
    bytes_accessed = 4 * (N * TN + batch * TN * C + 2 * C * LCp + 2 * LCp
                          + 2 * batch * N * Cp)

    # Raise the scoped VMEM limit only if the (double-buffered) blocks need it.
    block_bytes = 4 * (row_tile * TN + TN * C + 2 * C * LCp + 2 * LCp
                       + 2 * row_tile * Cp)
    vmem_limit = None
    if 2 * block_bytes > 24 * 1024 * 1024:
        vmem_limit = int(min(2.5 * block_bytes, 100 * 1024 * 1024))

    vals_b, idx_b = pl.pallas_call(
        kernel,
        out_shape=(jax.ShapeDtypeStruct((batch, N, Cp), jnp.float32),
                   jax.ShapeDtypeStruct((batch, N, Cp), jnp.int32)),
        grid=grid,
        in_specs=[
            pl.BlockSpec((row_tile, TN), lambda i, bb: (row_blk + i, 0)),
            pl.BlockSpec((None, TN, C), lambda i, bb: (bb, 0, 0)),
            pl.BlockSpec((C, LCp), lambda i, bb: (0, 0)),
            pl.BlockSpec((C, LCp), lambda i, bb: (0, 0)),
            pl.BlockSpec((1, LCp), lambda i, bb: (0, 0)),
            pl.BlockSpec((1, LCp), lambda i, bb: (0, 0)),
        ],
        out_specs=(pl.BlockSpec((None, row_tile, Cp), lambda i, bb: (bb, i, 0)),
                   pl.BlockSpec((None, row_tile, Cp), lambda i, bb: (bb, i, 0))),
        compiler_params=pltpu.CompilerParams(
            dimension_semantics=("parallel", "parallel"),
            vmem_limit_bytes=vmem_limit),
        cost_estimate=pl.CostEstimate(flops=flops, transcendentals=transc,
                                      bytes_accessed=bytes_accessed),
    )(adj_in, data_b, w_lhs, w_rhs, b_lhs, b_rhs)

    # (B, N, Cp) -> (N, B, Cp); tiny contiguous copies vs the kernel's work.
    return jnp.transpose(vals_b, (1, 0, 2)), jnp.transpose(idx_b, (1, 0, 2))


if __name__ == "__main__":
    # StsGcm config: filter_features == feature_num (C' == C), activation='GLU'.
    N = 8
    window_size = 3
    B = 2
    C = 32
    L = 2              # two GCN layers
    Cp = C

    key = jax.random.PRNGKey(0)
    k_data, k_adj, k_w, k_b = jax.random.split(key, 4)
    data = jax.random.normal(k_data, (window_size * N, B, C), dtype=jnp.float32)
    adj = jax.random.normal(k_adj, (window_size * N, window_size * N),
                            dtype=jnp.float32)

    # nn.Linear(C, 2*C') per GCN layer (torch layout (out, in)).
    bound = float(1.0 / jnp.sqrt(jnp.float32(C)))
    w = jax.random.uniform(k_w, (L, 2 * Cp, C), minval=-bound, maxval=bound,
                           dtype=jnp.float32)
    b = jax.random.uniform(k_b, (L, 2 * Cp), minval=-bound, maxval=bound,
                           dtype=jnp.float32)
    w_t = jnp.transpose(w, (0, 2, 1))                 # (L, C, 2C')

    values, indices = sts_gcm_forward(data, adj, w_t, b,
                                      window_size=window_size, N=N)
    jax.block_until_ready((values, indices))

    # Pure-JAX reference (same math as the PyTorch forward).
    ax = jnp.einsum('mk,kbc->mbc', adj, data,
                    precision=jax.lax.Precision.HIGHEST)          # (3N, B, C)
    lo = (window_size - 1) // 2 * N
    hi = (window_size + 1) // 2 * N
    per_layer = []
    for li in range(L):
        h = jnp.einsum('mbc,fc->mbf', ax, w[li],
                       precision=jax.lax.Precision.HIGHEST) + b[li]
        g = h[..., :Cp] * jax.nn.sigmoid(h[..., Cp:])
        per_layer.append(g[lo:hi])
    stacked = jnp.stack(per_layer, 0)                 # (L, N, B, C')
    ref_vals = stacked.max(0)

    assert values.shape == (N, B, Cp) and indices.shape == (N, B, Cp)
    assert jnp.allclose(values, ref_vals, atol=1e-4, rtol=1e-4)
    # Tie-tolerant index check: the selected layer's value must be (near-)maximal.
    picked = jnp.take_along_axis(stacked, indices[None].astype(jnp.int32), axis=0)[0]
    assert jnp.allclose(picked, ref_vals, atol=1e-4, rtol=1e-4)

    print("KERNEL_OK")
</pallas_src>

<mosaic_0001>
module attributes {stable_mosaic.version = 11 : i64} {
  func.func @_sts_gcm_kernel(%arg0: i32, %arg1: i32, %arg2: memref<8x24xf32, #tpu.memory_space<vmem>>, %arg3: memref<1x24x32xf32, #tpu.memory_space<vmem>>, %arg4: memref<32x64xf32, #tpu.memory_space<vmem>>, %arg5: memref<32x64xf32, #tpu.memory_space<vmem>>, %arg6: memref<1x64xf32, #tpu.memory_space<vmem>>, %arg7: memref<1x64xf32, #tpu.memory_space<vmem>>, %arg8: memref<1x8x32xf32, #tpu.memory_space<vmem>>, %arg9: memref<1x8x32xi32, #tpu.memory_space<vmem>>) attributes {dimension_semantics = [#tpu.dimension_semantics<parallel>, #tpu.dimension_semantics<parallel>], iteration_bounds = array<i64: 1, 2>, scalar_prefetch = 0 : i64, scratch_operands = 0 : i64, tpu.core_type = #tpu.core_type<tc>, window_params = [{transform_indices = @transform_0, window_bounds = array<i64: 8, 24>}, {transform_indices = @transform_1, window_bounds = array<i64: 1, 24, 32>}, {pipeline_mode = #tpu.pipeline_mode<synchronous>, transform_indices = @transform_2, window_bounds = array<i64: 32, 64>}, {pipeline_mode = #tpu.pipeline_mode<synchronous>, transform_indices = @transform_3, window_bounds = array<i64: 32, 64>}, {pipeline_mode = #tpu.pipeline_mode<synchronous>, transform_indices = @transform_4, window_bounds = array<i64: 1, 64>}, {pipeline_mode = #tpu.pipeline_mode<synchronous>, transform_indices = @transform_5, window_bounds = array<i64: 1, 64>}, {transform_indices = @transform_6, window_bounds = array<i64: 1, 8, 32>}, {transform_indices = @transform_7, window_bounds = array<i64: 1, 8, 32>}]} {
    %c0 = arith.constant 0 : index
    %c0_0 = arith.constant 0 : index
    %0 = vector.load %arg2[%c0, %c0_0] : memref<8x24xf32, #tpu.memory_space<vmem>>, vector<8x24xf32>
    %c0_1 = arith.constant 0 : index
    %c0_2 = arith.constant 0 : index
    %c0_3 = arith.constant 0 : index
    %1 = vector.load %arg3[%c0_1, %c0_2, %c0_3] : memref<1x24x32xf32, #tpu.memory_space<vmem>>, vector<1x24x32xf32>
    %2 = vector.shape_cast %1 : vector<1x24x32xf32> to vector<24x32xf32>
    %cst = arith.constant dense<0.000000e+00> : vector<8x32xf32>
    %3 = tpu.matmul %0, %2, %cst {dimension_numbers = #tpu.dot_dimension_numbers<[1], [0], [0], [1], [0, 0, 1, 1], [], []>} : vector<8x24xf32>, vector<24x32xf32>, vector<8x32xf32> -> vector<8x32xf32>
    %c0_4 = arith.constant 0 : index
    %c0_5 = arith.constant 0 : index
    %4 = vector.load %arg4[%c0_4, %c0_5] : memref<32x64xf32, #tpu.memory_space<vmem>>, vector<32x64xf32>
    %cst_6 = arith.constant dense<0.000000e+00> : vector<8x64xf32>
    %5 = tpu.matmul %3, %4, %cst_6 {dimension_numbers = #tpu.dot_dimension_numbers<[1], [0], [0], [1], [0, 0, 1, 1], [], []>} : vector<8x32xf32>, vector<32x64xf32>, vector<8x64xf32> -> vector<8x64xf32>
    %c0_7 = arith.constant 0 : index
    %c0_8 = arith.constant 0 : index
    %6 = vector.load %arg6[%c0_7, %c0_8] : memref<1x64xf32, #tpu.memory_space<vmem>>, vector<1x64xf32>
    %7 = vector.broadcast %6 : vector<1x64xf32> to vector<8x64xf32>
    %8 = arith.addf %5, %7 : vector<8x64xf32>
    %c0_9 = arith.constant 0 : index
    %c0_10 = arith.constant 0 : index
    %9 = vector.load %arg5[%c0_9, %c0_10] : memref<32x64xf32, #tpu.memory_space<vmem>>, vector<32x64xf32>
    %cst_11 = arith.constant dense<0.000000e+00> : vector<8x64xf32>
    %10 = tpu.matmul %3, %9, %cst_11 {dimension_numbers = #tpu.dot_dimension_numbers<[1], [0], [0], [1], [0, 0, 1, 1], [], []>} : vector<8x32xf32>, vector<32x64xf32>, vector<8x64xf32> -> vector<8x64xf32>
    %c0_12 = arith.constant 0 : index
    %c0_13 = arith.constant 0 : index
    %11 = vector.load %arg7[%c0_12, %c0_13] : memref<1x64xf32, #tpu.memory_space<vmem>>, vector<1x64xf32>
    %12 = vector.broadcast %11 : vector<1x64xf32> to vector<8x64xf32>
    %13 = arith.addf %10, %12 : vector<8x64xf32>
    %14 = arith.negf %13 : vector<8x64xf32>
    %15 = math.exp %14 : vector<8x64xf32>
    %cst_14 = arith.constant 1.000000e+00 : f32
    %16 = vector.broadcast %cst_14 : f32 to vector<8x64xf32>
    %17 = arith.addf %16, %15 : vector<8x64xf32>
    %18 = arith.divf %16, %17 : vector<8x64xf32>
    %19 = arith.mulf %8, %18 : vector<8x64xf32>
    %20 = vector.extract_strided_slice %19 {offsets = [0, 0], sizes = [8, 32], strides = [1, 1]} : vector<8x64xf32> to vector<8x32xf32>
    %c0_i32 = arith.constant 0 : i32
    %21 = vector.broadcast %c0_i32 : i32 to vector<8x32xi32>
    %22 = vector.extract_strided_slice %19 {offsets = [0, 32], sizes = [8, 32], strides = [1, 1]} : vector<8x64xf32> to vector<8x32xf32>
    %23 = arith.cmpf ogt, %22, %20 : vector<8x32xf32>
    %24 = arith.select %23, %22, %20 : vector<8x32xi1>, vector<8x32xf32>
    %c1_i32 = arith.constant 1 : i32
    %25 = vector.broadcast %c1_i32 : i32 to vector<8x32xi32>
    %26 = arith.select %23, %25, %21 : vector<8x32xi1>, vector<8x32xi32>
    %c0_15 = arith.constant 0 : index
    %c0_16 = arith.constant 0 : index
    %c0_17 = arith.constant 0 : index
    %27 = vector.load %arg8[%c0_15, %c0_16, %c0_17] : memref<1x8x32xf32, #tpu.memory_space<vmem>>, vector<1x8x32xf32>
    %28 = vector.shape_cast %27 : vector<1x8x32xf32> to vector<8x32xf32>
    %29 = vector.shape_cast %24 : vector<8x32xf32> to vector<1x8x32xf32>
    tpu.vector_store %arg8[%c0_15, %c0_16, %c0_17], %29 {strides = array<i32>} : memref<1x8x32xf32, #tpu.memory_space<vmem>>, vector<1x8x32xf32>,
    %c0_18 = arith.constant 0 : index
    %c0_19 = arith.constant 0 : index
    %c0_20 = arith.constant 0 : index
    %30 = vector.load %arg9[%c0_18, %c0_19, %c0_20] : memref<1x8x32xi32, #tpu.memory_space<vmem>>, vector<1x8x32xi32>
    %31 = vector.shape_cast %30 : vector<1x8x32xi32> to vector<8x32xi32>
    %32 = vector.shape_cast %26 : vector<8x32xi32> to vector<1x8x32xi32>
    tpu.vector_store %arg9[%c0_18, %c0_19, %c0_20], %32 {strides = array<i32>} : memref<1x8x32xi32, #tpu.memory_space<vmem>>, vector<1x8x32xi32>,
    return
  }
  func.func @transform_0(%arg0: i32, %arg1: i32) -> (i32, i32) {
    %c1_i32 = arith.constant 1 : i32
    %0 = arith.addi %c1_i32, %arg0 : i32
    %c0_i32 = arith.constant 0 : i32
    %c0_i32_0 = arith.constant 0 : i32
    return %0, %c0_i32 : i32, i32
  }
  func.func @transform_1(%arg0: i32, %arg1: i32) -> (i32, i32, i32) {
    %c0_i32 = arith.constant 0 : i32
    %c0_i32_0 = arith.constant 0 : i32
    %c0_i32_1 = arith.constant 0 : i32
    return %arg1, %c0_i32, %c0_i32_0 : i32, i32, i32
  }
  func.func @transform_2(%arg0: i32, %arg1: i32) -> (i32, i32) {
    %c0_i32 = arith.constant 0 : i32
    %c0_i32_0 = arith.constant 0 : i32
    %c0_i32_1 = arith.constant 0 : i32
    return %c0_i32, %c0_i32_0 : i32, i32
  }
  func.func @transform_3(%arg0: i32, %arg1: i32) -> (i32, i32) {
    %c0_i32 = arith.constant 0 : i32
    %c0_i32_0 = arith.constant 0 : i32
    %c0_i32_1 = arith.constant 0 : i32
    return %c0_i32, %c0_i32_0 : i32, i32
  }
  func.func @transform_4(%arg0: i32, %arg1: i32) -> (i32, i32) {
    %c0_i32 = arith.constant 0 : i32
    %c0_i32_0 = arith.constant 0 : i32
    %c0_i32_1 = arith.constant 0 : i32
    return %c0_i32, %c0_i32_0 : i32, i32
  }
  func.func @transform_5(%arg0: i32, %arg1: i32) -> (i32, i32) {
    %c0_i32 = arith.constant 0 : i32
    %c0_i32_0 = arith.constant 0 : i32
    %c0_i32_1 = arith.constant 0 : i32
    return %c0_i32, %c0_i32_0 : i32, i32
  }
  func.func @transform_6(%arg0: i32, %arg1: i32) -> (i32, i32, i32) {
    %c0_i32 = arith.constant 0 : i32
    %c0_i32_0 = arith.constant 0 : i32
    return %arg1, %arg0, %c0_i32 : i32, i32, i32
  }
  func.func @transform_7(%arg0: i32, %arg1: i32) -> (i32, i32, i32) {
    %c0_i32 = arith.constant 0 : i32
    %c0_i32_0 = arith.constant 0 : i32
    return %arg1, %arg0, %c0_i32 : i32, i32, i32
  }
}

</mosaic_0001>

<llo_original>
// kernel: sts_gcm_forward.1
$region0: #{sts_gcm_forward.1}
  #allocation0 [shape = 'u32[]', space=smem, size = 0x4, offset = 0x4, fixed_abs, tag = 'smem constant byte address 0x4 - core index']
  #allocation1 [shape = 'u32[72,128]{1,0:T(1,128)}', space=vmem, size = 0x9000, scoped, tag = 'internal scratch']
  %s0 = inlined_call_operand.vmem [shape: f32[24,24], index: 0, kind: input, shape index: {}]
  %s1 = inlined_call_operand.vmem [shape: f32[2,24,32], index: 1, kind: input, shape index: {}]
  %s2 = inlined_call_operand.vmem [shape: f32[32,64], index: 2, kind: input, shape index: {}]
  %s3 = inlined_call_operand.vmem [shape: f32[32,64], index: 3, kind: input, shape index: {}]
  %s4 = inlined_call_operand.vmem [shape: f32[1,64], index: 4, kind: input, shape index: {}]
  %s5 = inlined_call_operand.vmem [shape: f32[1,64], index: 5, kind: input, shape index: {}]
  %s6 = inlined_call_operand.vmem [shape: f32[2,8,32], index: 6, kind: output, shape index: {0}]
  %s7 = inlined_call_operand.vmem [shape: s32[2,8,32], index: 7, kind: output, shape index: {1}]
  %8 = xla_tuple %s6, %s7
  %s9 = sld [smem:[#allocation0]]
  $region65: #{sts_gcm_forward.1} parent=0
    _
  %s11 = ssub.s32 1, %s9
  %s12 = scalar_select 0, %s11, %s9
  loop: start=0, step=1, limit=4
  $region2: #{sts_gcm_forward.1} parent=0 // loop_pre_header
    _
  $region3: #{sts_gcm_forward.1} parent=0 // loop_header
    %s14 = sphi 0, %s18
    %p15 = scmp.ge.s32.totalorder %s14, 4
    %s21 = sphi 0, %s33
    %s22 = sphi 0, %s29
    %s23 = sphi 0, %s21
    %s24 = sphi 0, %s22
    %s25 = sphi 0, %s23
    %s26 = sphi 0, %s24
    %s38 = sphi 0, %s40
    %s41 = sphi 0, %s38
    %s42 = sphi 0, %s41
    %s58 = sphi 0, %s42
    %s64 = sphi 0, %s66
    %s67 = sphi 0, %s64
    %s68 = sphi 0, %s67
    %s84 = sphi 0, %s68
    %s88 = sphi 0, %s88
    %s90 = sphi 0, %s88
    %s91 = sphi 0, %s90
    %s105 = sphi 0, %s91
    %s109 = sphi 0, %s109
    %s111 = sphi 0, %s109
    %s112 = sphi 0, %s111
    %s126 = sphi 0, %s112
    %s130 = sphi 0, %s130
    %s132 = sphi 0, %s130
    %s133 = sphi 0, %s132
    %s147 = sphi 0, %s133
    %s151 = sphi 0, %s151
    %s153 = sphi 0, %s151
    %s154 = sphi 0, %s153
    %s168 = sphi 0, %s154
    %s176 = sphi 0, %s178
    %s179 = sphi 0, %s176
    %s180 = sphi 0, %s179
    %s196 = sphi 0, %s180
    %s204 = sphi 0, %s206
    %s207 = sphi 0, %s204
    %s208 = sphi 0, %s207
    %s224 = sphi 0, %s208
  $region4: #{sts_gcm_forward.1} parent=0 // loop_header_branch
    %17 = sbr.rel (%p15) target = $region8
  $region5: #{sts_gcm_forward.1} parent=0 // loop_body
    %s19 = ssub.s32 %s14, 1
    %s20 = ssub.s32 %s14, 2
    %s27 = sadd.s32 1, %s22
    %p28 = scmp.ge.s32.totalorder %s27, 2
    %s29 = scalar_select %p28, 0, %s27
    %s30 = sadd.s32 1, %s21
    %s31 = scalar_select %p28, %s30, %s21
    %p32 = scmp.ge.s32.totalorder %s31, 1
    %s33 = scalar_select %p32, 0, %s31
    %s34 = sadd.s32 %s21, 1
    %s35 = sadd.s32 %s33, 1
    %s36 = ssub.s32 %s34, %s35
    %p37 = scmp.eq.s32.totalorder %s36, 0
    %s39 = sadd.s32 %s38, 1
    %s40 = scalar_select %p37, %s38, %s39
    %p43 = pneg %p37
    %p44 = scmp.eq.s32.totalorder %s14, 1
    %p45 = por %p43, %p44
    %p46 = scmp.ne.s32.totalorder %s38, %s41
    %p47 = scmp.eq.s32.totalorder %s14, 0
    %p48 = por %p46, %p47
    %p49 = scmp.ne.s32.totalorder %s38, %s41
    %p50 = scmp.eq.s32.totalorder %s19, 1
    %p51 = por %p49, %p50
    %p52 = scmp.ne.s32.totalorder %s41, %s42
    %p53 = scmp.eq.s32.totalorder %s19, 0
    %p54 = por %p52, %p53
    %p55 = scmp.ne.s32.totalorder %s41, %s42
    %p56 = scmp.eq.s32.totalorder %s20, 1
    %p57 = por %p55, %p56
    %p59 = scmp.ne.s32.totalorder %s42, %s58
    %p60 = scmp.eq.s32.totalorder %s20, 0
    %p61 = por %p59, %p60
    %s62 = ssub.s32 %s22, %s29
    %p63 = scmp.eq.s32.totalorder %s62, 0
    %s65 = sadd.s32 %s64, 1
    %s66 = scalar_select %p63, %s64, %s65
    %p69 = pneg %p63
    %p70 = scmp.eq.s32.totalorder %s14, 1
    %p71 = por %p69, %p70
    %p72 = scmp.ne.s32.totalorder %s64, %s67
    %p73 = scmp.eq.s32.totalorder %s14, 0
    %p74 = por %p72, %p73
    %p75 = scmp.ne.s32.totalorder %s64, %s67
    %p76 = scmp.eq.s32.totalorder %s19, 1
    %p77 = por %p75, %p76
    %p78 = scmp.ne.s32.totalorder %s67, %s68
    %p79 = scmp.eq.s32.totalorder %s19, 0
    %p80 = por %p78, %p79
    %p81 = scmp.ne.s32.totalorder %s67, %s68
    %p82 = scmp.eq.s32.totalorder %s20, 1
    %p83 = por %p81, %p82
    %p85 = scmp.ne.s32.totalorder %s68, %s84
    %p86 = scmp.eq.s32.totalorder %s20, 0
    %p87 = por %p85, %p86
    %s89 = sadd.s32 %s88, 1
    %p92 = scmp.eq.s32.totalorder %s14, 1
    %p93 = scmp.ne.s32.totalorder %s88, %s90
    %p94 = scmp.eq.s32.totalorder %s14, 0
    %p95 = por %p93, %p94
    %p96 = scmp.ne.s32.totalorder %s88, %s90
    %p97 = scmp.eq.s32.totalorder %s19, 1
    %p98 = por %p96, %p97
    %p99 = scmp.ne.s32.totalorder %s90, %s91
    %p100 = scmp.eq.s32.totalorder %s19, 0
    %p101 = por %p99, %p100
    %p102 = scmp.ne.s32.totalorder %s90, %s91
    %p103 = scmp.eq.s32.totalorder %s20, 1
    %p104 = por %p102, %p103
    %p106 = scmp.ne.s32.totalorder %s91, %s105
    %p107 = scmp.eq.s32.totalorder %s20, 0
    %p108 = por %p106, %p107
    %s110 = sadd.s32 %s109, 1
    %p113 = scmp.eq.s32.totalorder %s14, 1
    %p114 = scmp.ne.s32.totalorder %s109, %s111
    %p115 = scmp.eq.s32.totalorder %s14, 0
    %p116 = por %p114, %p115
    %p117 = scmp.ne.s32.totalorder %s109, %s111
    %p118 = scmp.eq.s32.totalorder %s19, 1
    %p119 = por %p117, %p118
    %p120 = scmp.ne.s32.totalorder %s111, %s112
    %p121 = scmp.eq.s32.totalorder %s19, 0
    %p122 = por %p120, %p121
    %p123 = scmp.ne.s32.totalorder %s111, %s112
    %p124 = scmp.eq.s32.totalorder %s20, 1
    %p125 = por %p123, %p124
    %p127 = scmp.ne.s32.totalorder %s112, %s126
    %p128 = scmp.eq.s32.totalorder %s20, 0
    %p129 = por %p127, %p128
    %s131 = sadd.s32 %s130, 1
    %p134 = scmp.eq.s32.totalorder %s14, 1
    %p135 = scmp.ne.s32.totalorder %s130, %s132
    %p136 = scmp.eq.s32.totalorder %s14, 0
    %p137 = por %p135, %p136
    %p138 = scmp.ne.s32.totalorder %s130, %s132
    %p139 = scmp.eq.s32.totalorder %s19, 1
    %p140 = por %p138, %p139
    %p141 = scmp.ne.s32.totalorder %s132, %s133
    %p142 = scmp.eq.s32.totalorder %s19, 0
    %p143 = por %p141, %p142
    %p144 = scmp.ne.s32.totalorder %s132, %s133
    %p145 = scmp.eq.s32.totalorder %s20, 1
    %p146 = por %p144, %p145
    %p148 = scmp.ne.s32.totalorder %s133, %s147
    %p149 = scmp.eq.s32.totalorder %s20, 0
    %p150 = por %p148, %p149
    %s152 = sadd.s32 %s151, 1
    %p155 = scmp.eq.s32.totalorder %s14, 1
    %p156 = scmp.ne.s32.totalorder %s151, %s153
    %p157 = scmp.eq.s32.totalorder %s14, 0
    %p158 = por %p156, %p157
    %p159 = scmp.ne.s32.totalorder %s151, %s153
    %p160 = scmp.eq.s32.totalorder %s19, 1
    %p161 = por %p159, %p160
    %p162 = scmp.ne.s32.totalorder %s153, %s154
    %p163 = scmp.eq.s32.totalorder %s19, 0
    %p164 = por %p162, %p163
    %p165 = scmp.ne.s32.totalorder %s153, %s154
    %p166 = scmp.eq.s32.totalorder %s20, 1
    %p167 = por %p165, %p166
    %p169 = scmp.ne.s32.totalorder %s154, %s168
    %p170 = scmp.eq.s32.totalorder %s20, 0
    %p171 = por %p169, %p170
    %s172 = ssub.s32 %s22, %s29
    %s173 = ssub.s32 %s21, %s33
    %s174 = sor.u32 %s172, %s173
    %p175 = scmp.eq.s32.totalorder %s174, 0
    %s177 = sadd.s32 %s176, 1
    %s178 = scalar_select %p175, %s176, %s177
    %p181 = pneg %p175
    %p182 = scmp.eq.s32.totalorder %s14, 1
    %p183 = por %p181, %p182
    %p184 = scmp.ne.s32.totalorder %s176, %s179
    %p185 = scmp.eq.s32.totalorder %s14, 0
    %p186 = por %p184, %p185
    %p187 = scmp.ne.s32.totalorder %s176, %s179
    %p188 = scmp.eq.s32.totalorder %s19, 1
    %p189 = por %p187, %p188
    %p190 = scmp.ne.s32.totalorder %s179, %s180
    %p191 = scmp.eq.s32.totalorder %s19, 0
    %p192 = por %p190, %p191
    %p193 = scmp.ne.s32.totalorder %s179, %s180
    %p194 = scmp.eq.s32.totalorder %s20, 1
    %p195 = por %p193, %p194
    %p197 = scmp.ne.s32.totalorder %s180, %s196
    %p198 = scmp.eq.s32.totalorder %s20, 0
    %p199 = por %p197, %p198
    %s200 = ssub.s32 %s22, %s29
    %s201 = ssub.s32 %s21, %s33
    %s202 = sor.u32 %s200, %s201
    %p203 = scmp.eq.s32.totalorder %s202, 0
    %s205 = sadd.s32 %s204, 1
    %s206 = scalar_select %p203, %s204, %s205
    %p209 = pneg %p203
    %p210 = scmp.eq.s32.totalorder %s14, 1
    %p211 = por %p209, %p210
    %p212 = scmp.ne.s32.totalorder %s204, %s207
    %p213 = scmp.eq.s32.totalorder %s14, 0
    %p214 = por %p212, %p213
    %p215 = scmp.ne.s32.totalorder %s204, %s207
    %p216 = scmp.eq.s32.totalorder %s19, 1
    %p217 = por %p215, %p216
    %p218 = scmp.ne.s32.totalorder %s207, %s208
    %p219 = scmp.eq.s32.totalorder %s19, 0
    %p220 = por %p218, %p219
    %p221 = scmp.ne.s32.totalorder %s207, %s208
    %p222 = scmp.eq.s32.totalorder %s20, 1
    %p223 = por %p221, %p222
    %p225 = scmp.ne.s32.totalorder %s208, %s224
    %p226 = scmp.eq.s32.totalorder %s20, 0
    %p227 = por %p225, %p226
    %p228 = scmp.le.s32.totalorder 1, %s14
    %p229 = scmp.lt.s32.totalorder %s14, 3
    %p230 = pnand %p228, %p229
    %p231 = pneg %p230
    // Predicated region
    $region9: #{sts_gcm_forward.1} parent=5 // pred_check
      _
    $region10: #{sts_gcm_forward.1} parent=5 // pred_check_branch
      %233 = sbr.rel (%p230) target = $region12
    $region11: #{sts_gcm_forward.1} parent=5 // pred_region
      %s234 = ssub.s32 %s14, 1
      // Predicated region
      $region13: #{sts_gcm_forward.1} parent=11 // pred_check
        %p235 = pneg %p54
      $region14: #{sts_gcm_forward.1} parent=11 // pred_check_branch
        %237 = sbr.rel (%p235) target = $region16
      $region15: #{sts_gcm_forward.1} parent=11 // pred_region
        %s238 = sadd.s32 %s23, 1
        %p239 = scmp.lt.s32.totalorder %s238, 2
        %s240 = scalar_select %p239, %s238, 2
        %s241 = smul.addr %s240, 8
        %s242 = scalar_lea.vmem %s0, %s241
        %s243 = sadd.s32 %s23, 1
      $region16: #{sts_gcm_forward.1} parent=11 // pred_fallthru
        _
      // Predicated region
      $region17: #{sts_gcm_forward.1} parent=11 // pred_check
        %p244 = pneg %p101
      $region18: #{sts_gcm_forward.1} parent=11 // pred_check_branch
        %246 = sbr.rel (%p244) target = $region20
      $region19: #{sts_gcm_forward.1} parent=11 // pred_region
        _
      $region20: #{sts_gcm_forward.1} parent=11 // pred_fallthru
        _
      // Predicated region
      $region21: #{sts_gcm_forward.1} parent=11 // pred_check
        %p247 = pneg %p122
      $region22: #{sts_gcm_forward.1} parent=11 // pred_check_branch
        %249 = sbr.rel (%p247) target = $region24
      $region23: #{sts_gcm_forward.1} parent=11 // pred_region
        _
      $region24: #{sts_gcm_forward.1} parent=11 // pred_fallthru
        _
      // Predicated region
      $region25: #{sts_gcm_forward.1} parent=11 // pred_check
        %p250 = pneg %p143
      $region26: #{sts_gcm_forward.1} parent=11 // pred_check_branch
        %252 = sbr.rel (%p250) target = $region28
      $region27: #{sts_gcm_forward.1} parent=11 // pred_region
        _
      $region28: #{sts_gcm_forward.1} parent=11 // pred_fallthru
        _
      // Predicated region
      $region29: #{sts_gcm_forward.1} parent=11 // pred_check
        %p253 = pneg %p164
      $region30: #{sts_gcm_forward.1} parent=11 // pred_check_branch
        %255 = sbr.rel (%p253) target = $region32
      $region31: #{sts_gcm_forward.1} parent=11 // pred_region
        _
      $region32: #{sts_gcm_forward.1} parent=11 // pred_fallthru
        _
    $region12: #{sts_gcm_forward.1} parent=5 // pred_fallthru
      _
    %p256 = scmp.lt.s32.totalorder %s14, 2
    // Predicated region
    $region33: #{sts_gcm_forward.1} parent=5 // pred_check
      %p257 = pneg %p256
    $region34: #{sts_gcm_forward.1} parent=5 // pred_check_branch
      %259 = sbr.rel (%p257) target = $region36
    $region35: #{sts_gcm_forward.1} parent=5 // pred_region
      // Predicated region
      $region37: #{sts_gcm_forward.1} parent=35 // pred_check
        %p260 = pneg %p74
      $region38: #{sts_gcm_forward.1} parent=35 // pred_check_branch
        %262 = sbr.rel (%p260) target = $region40
      $region39: #{sts_gcm_forward.1} parent=35 // pred_region
        %p263 = scmp.lt.s32.totalorder %s22, 1
        %s264 = scalar_select %p263, %s22, 1
        %s265 = smul.addr %s264, 3
        %s266 = smul.addr %s265, 8
        %s267 = scalar_lea.vmem %s1, %s266
      $region40: #{sts_gcm_forward.1} parent=35 // pred_fallthru
        _
    $region36: #{sts_gcm_forward.1} parent=5 // pred_fallthru
      _
    %p268 = scmp.le.s32.totalorder 1, %s14
    %p269 = scmp.lt.s32.totalorder %s14, 3
    %p270 = pnand %p268, %p269
    %p271 = pneg %p270
    // Predicated region
    $region41: #{sts_gcm_forward.1} parent=5 // pred_check
      _
    $region42: #{sts_gcm_forward.1} parent=5 // pred_check_branch
      %273 = sbr.rel (%p270) target = $region44
    $region43: #{sts_gcm_forward.1} parent=5 // pred_region
      %s274 = ssub.s32 %s14, 1
      %s275 = sadd.s32 %s23, 1
      %p276 = scmp.lt.s32.totalorder %s275, 2
      %s277 = scalar_select %p276, %s275, 2
      %s278 = smul.addr %s277, 8
      %s279 = scalar_lea.vmem %s0, %s278
      %p280 = pneg %p54
      %p281 = pneg %p51
      %p282 = scmp.lt.s32.totalorder %s24, 1
      %s283 = scalar_select %p282, %s24, 1
      %s284 = smul.addr %s283, 3
      %s285 = smul.addr %s284, 8
      %s286 = scalar_lea.vmem %s1, %s285
      %p287 = pneg %p80
      %p288 = pneg %p77
      %p289 = pneg %p101
      %p290 = pneg %p98
      %p291 = pneg %p122
      %p292 = pneg %p119
      %p293 = pneg %p143
      %p294 = pneg %p140
      %p295 = pneg %p164
      %p296 = pneg %p161
      %p297 = pneg %p192
      %p298 = pneg %p189
      %p299 = scmp.lt.s32.totalorder %s24, 1
      %s300 = scalar_select %p299, %s24, 1
      %p301 = scmp.lt.s32.totalorder %s23, 0
      %s302 = scalar_select %p301, %s23, 0
      %s303 = sadd.s32 %s302, %s300
      %s304 = smul.addr %s303, 8
      %s305 = scalar_lea.vmem %s6, %s304
      %p306 = pneg %p220
      %p307 = pneg %p217
      %p308 = scmp.lt.s32.totalorder %s24, 1
      %s309 = scalar_select %p308, %s24, 1
      %p310 = scmp.lt.s32.totalorder %s23, 0
      %s311 = scalar_select %p310, %s23, 0
      %s312 = sadd.s32 %s311, %s309
      %s313 = smul.addr %s312, 8
      %s314 = scalar_lea.vmem %s7, %s313
      %s315 = sadd.s32 %s23, 1
      %p316 = scmp.lt.s32.totalorder %s315, 2
      %s317 = scalar_select %p316, %s315, 2
      %s318 = smul.addr %s317, 8
      %s319 = scalar_lea.vmem %s0, %s318
      %s320 = sadd.s32 %s23, 1
      %p321 = scmp.lt.s32.totalorder %s24, 1
      %s322 = scalar_select %p321, %s24, 1
      %s323 = smul.addr %s322, 3
      %s324 = smul.addr %s323, 8
      %s325 = scalar_lea.vmem %s1, %s324
      %p326 = scmp.lt.s32.totalorder %s24, 1
      %s327 = scalar_select %p326, %s24, 1
      %p328 = scmp.lt.s32.totalorder %s23, 0
      %s329 = scalar_select %p328, %s23, 0
      %s330 = sadd.s32 %s329, %s327
      %s331 = smul.addr %s330, 8
      %s332 = scalar_lea.vmem %s6, %s331
      %p333 = scmp.lt.s32.totalorder %s24, 1
      %s334 = scalar_select %p333, %s24, 1
      %p335 = scmp.lt.s32.totalorder %s23, 0
      %s336 = scalar_select %p335, %s23, 0
      %s337 = sadd.s32 %s336, %s334
      %s338 = smul.addr %s337, 8
      %s339 = scalar_lea.vmem %s7, %s338
      %v340 = vld [vmem:[%s319] sm:$0xff]
      %v341 = vld [vmem:[%s325] sm:$0xff]
      %v342 = vld [vmem:[%s325 + $0x8] sm:$0xff]
      %v343 = vld [vmem:[%s325 + $0x10] sm:$0xff]
      %vm344 = vcmask 195584
      %v346 = vsel %vm344, %v340, 0
      %348 = vmatpush.msra.mxu0 0.0
      %349 = vmatpush.msra.mxu0 0.0
      %350 = vmatpush.msra.mxu0 0.0
      %351 = vmatpush.msra.mxu0 0.0
      %352 = vmatpush.msra.mxu0 0.0
      %353 = vmatpush.msra.mxu0 0.0
      %354 = vmatpush.msra.mxu0 0.0
      %355 = vmatpush.msra.mxu0 0.0
      %356 = vmatpush.msra.mxu0 0.0
      %357 = vmatpush.msra.mxu0 0.0
      %358 = vmatpush.msra.mxu0 0.0
      %359 = vmatpush.msra.mxu0 0.0
      %360 = vmatpush.msra.mxu0 0.0
      %361 = vmatpush.msra.mxu0 %v343
      %362 = vmatpush.msra.mxu0 %v342
      %363 = vmatpush.msra.mxu0 %v341
      %364 = vmatmul.f32.gmra.mxu0 %v346
      %v365 = vpop.f32.mrf.mxu0
      %v366 = vadd.f32 0.0, %v365
      %367 = vdwg.mxu0
      %v368 = vld [vmem:[%s2] sm:$0xff]
      %v369 = vld [vmem:[%s2 + $0x8] sm:$0xff]
      %v370 = vld [vmem:[%s2 + $0x10] sm:$0xff]
      %v371 = vld [vmem:[%s2 + $0x18] sm:$0xff]
      %v372 = vld [vmem:[%s4] sm:$0x1]
      %v374 = vperm.slane %v372, 0
      %vm376 = vcmask 261120
      %v378 = vsel %vm376, %v366, 0
      %380 = vmatpush.msra.mxu0 0.0
      %381 = vmatpush.msra.mxu0 0.0
      %382 = vmatpush.msra.mxu0 0.0
      %383 = vmatpush.msra.mxu0 0.0
      %384 = vmatpush.msra.mxu0 0.0
      %385 = vmatpush.msra.mxu0 0.0
      %386 = vmatpush.msra.mxu0 0.0
      %387 = vmatpush.msra.mxu0 0.0
      %388 = vmatpush.msra.mxu0 0.0
      %389 = vmatpush.msra.mxu0 0.0
      %390 = vmatpush.msra.mxu0 0.0
      %391 = vmatpush.msra.mxu0 0.0
      %392 = vmatpush.msra.mxu0 %v371
      %393 = vmatpush.msra.mxu0 %v370
      %394 = vmatpush.msra.mxu0 %v369
      %395 = vmatpush.msra.mxu0 %v368
      %396 = vmatmul.f32.gmra.mxu0 %v378
      %v397 = vpop.f32.mrf.mxu0
      %v398 = vadd.f32 %v374, %v397
      %399 = vdwg.mxu0
      %v400 = vld [vmem:[%s3] sm:$0xff]
      %v401 = vld [vmem:[%s3 + $0x8] sm:$0xff]
      %v402 = vld [vmem:[%s3 + $0x10] sm:$0xff]
      %v403 = vld [vmem:[%s3 + $0x18] sm:$0xff]
      %v404 = vld [vmem:[%s5] sm:$0x1]
      %v406 = vperm.slane %v404, 0
      %408 = vmatpush.msra.mxu0 0.0
      %409 = vmatpush.msra.mxu0 0.0
      %410 = vmatpush.msra.mxu0 0.0
      %411 = vmatpush.msra.mxu0 0.0
      %412 = vmatpush.msra.mxu0 0.0
      %413 = vmatpush.msra.mxu0 0.0
      %414 = vmatpush.msra.mxu0 0.0
      %415 = vmatpush.msra.mxu0 0.0
      %416 = vmatpush.msra.mxu0 0.0
      %417 = vmatpush.msra.mxu0 0.0
      %418 = vmatpush.msra.mxu0 0.0
      %419 = vmatpush.msra.mxu0 0.0
      %420 = vmatpush.msra.mxu0 %v403
      %421 = vmatpush.msra.mxu0 %v402
      %422 = vmatpush.msra.mxu0 %v401
      %423 = vmatpush.msra.mxu0 %v400
      %424 = vmatmul.f32.gmra.mxu0 %v378
      %v425 = vpop.f32.mrf.mxu0
      %v426 = vadd.f32 %v406, %v425
      %427 = vdwg.mxu0
      %v428 = vxor.u32 %v426, 2147483648
      %v429 = vmul.f32 %v428, 1.442695
      %v430 = vpow.pop %v429
      %v431 = vadd.f32 %v430, 1.0
      %v432 = vrcp.pop %v431
      %v433 = vmul.f32 %v431, %v432
      %v434 = vsub.f32 1.0, %v433
      %v435 = vmul.f32 %v432, %v434
      %v436 = vadd.f32 %v432, %v435
      %vm437 = vweird.f32 %v431
      %vm438 = vweird.f32 %v432
      %vm439 = vmor %vm437, %vm438
      %v440 = vsel %vm439, %v432, %v436
      %v441 = vand.u32 2147483647, %v431
      %vm442 = vcmp.eq.f32.partialorder %v441, 8.507059e+37
      %v443 = vand.u32 %v431, 2147483648
      %v444 = vor.u32 1.1754944e-38, %v443
      %v445 = vsel %vm442, %v444, %v440
      %v446 = vmul.f32 1.0, %v445
      %v447 = vmul.f32 %v398, %v446
      %449 = vrot.lane.b32.xlu0 %v447, 32
      %v450 = vpop.permute.xlu0 %449
      %vm452 = vcmp.gt.f32.partialorder %v447, %v450
      %v453 = vsel %vm452, %v447, %v450
      %v454 = vsel %vm452, 1, 0
      %456 = vrot.lane.b32.xlu0 %v453, 96
      %v457 = vpop.permute.xlu0 %456
      %459 = vst.msk [vmem:[%s332] sm:$0xff] %vm376, %v457
      %460 = vrot.lane.b32.xlu0 %v454, 96
      %v461 = vpop.permute.xlu0 %460
      %462 = vst.msk [vmem:[%s339] sm:$0xff] %vm376, %v461
      %p463 = scmp.lt.s32.totalorder %s24, 1
      %s464 = scalar_select %p463, %s24, 1
      %p465 = scmp.lt.s32.totalorder %s23, 0
      %s466 = scalar_select %p465, %s23, 0
      %s467 = sadd.s32 %s466, %s464
      %s468 = smul.addr %s467, 8
      %s469 = scalar_lea.vmem %s6, %s468
      %p470 = scmp.lt.s32.totalorder %s24, 1
      %s471 = scalar_select %p470, %s24, 1
      %p472 = scmp.lt.s32.totalorder %s23, 0
      %s473 = scalar_select %p472, %s23, 0
      %s474 = sadd.s32 %s473, %s471
      %s475 = smul.addr %s474, 8
      %s476 = scalar_lea.vmem %s7, %s475
      // Predicated region
      $region45: #{sts_gcm_forward.1} parent=43 // pred_check
        %p477 = pneg %p189
      $region46: #{sts_gcm_forward.1} parent=43 // pred_check_branch
        %479 = sbr.rel (%p477) target = $region48
      $region47: #{sts_gcm_forward.1} parent=43 // pred_region
        _
      $region48: #{sts_gcm_forward.1} parent=43 // pred_fallthru
        _
      // Predicated region
      $region49: #{sts_gcm_forward.1} parent=43 // pred_check
        %p480 = pneg %p217
      $region50: #{sts_gcm_forward.1} parent=43 // pred_check_branch
        %482 = sbr.rel (%p480) target = $region52
      $region51: #{sts_gcm_forward.1} parent=43 // pred_region
        _
      $region52: #{sts_gcm_forward.1} parent=43 // pred_fallthru
        _
    $region44: #{sts_gcm_forward.1} parent=5 // pred_fallthru
      _
    %p483 = scmp.le.s32.totalorder 2, %s14
    // Predicated region
    $region53: #{sts_gcm_forward.1} parent=5 // pred_check
      %p484 = pneg %p483
    $region54: #{sts_gcm_forward.1} parent=5 // pred_check_branch
      %486 = sbr.rel (%p484) target = $region56
    $region55: #{sts_gcm_forward.1} parent=5 // pred_region
      %s487 = ssub.s32 %s14, 2
      // Predicated region
      $region57: #{sts_gcm_forward.1} parent=55 // pred_check
        %p488 = pneg %p195
      $region58: #{sts_gcm_forward.1} parent=55 // pred_check_branch
        %490 = sbr.rel (%p488) target = $region60
      $region59: #{sts_gcm_forward.1} parent=55 // pred_region
        %p491 = scmp.lt.s32.totalorder %s26, 1
        %s492 = scalar_select %p491, %s26, 1
        %p493 = scmp.lt.s32.totalorder %s25, 0
        %s494 = scalar_select %p493, %s25, 0
        %s495 = sadd.s32 %s494, %s492
        %s496 = smul.addr %s495, 8
        %s497 = scalar_lea.vmem %s6, %s496
      $region60: #{sts_gcm_forward.1} parent=55 // pred_fallthru
        _
      // Predicated region
      $region61: #{sts_gcm_forward.1} parent=55 // pred_check
        %p498 = pneg %p223
      $region62: #{sts_gcm_forward.1} parent=55 // pred_check_branch
        %500 = sbr.rel (%p498) target = $region64
      $region63: #{sts_gcm_forward.1} parent=55 // pred_region
        %p501 = scmp.lt.s32.totalorder %s26, 1
        %s502 = scalar_select %p501, %s26, 1
        %p503 = scmp.lt.s32.totalorder %s25, 0
        %s504 = scalar_select %p503, %s25, 0
        %s505 = sadd.s32 %s504, %s502
        %s506 = smul.addr %s505, 8
        %s507 = scalar_lea.vmem %s7, %s506
      $region64: #{sts_gcm_forward.1} parent=55 // pred_fallthru
        _
    $region56: #{sts_gcm_forward.1} parent=5 // pred_fallthru
      _
  $region6: #{sts_gcm_forward.1} parent=0 // loop_footer
    %s18 = sadd.s32 1, %s14
  $region7: #{sts_gcm_forward.1} parent=0 // loop_footer_branch
    %13 = sbr.rel target = $region3
  $region8: #{sts_gcm_forward.1} parent=0 // loop_exit
    _

</llo_original>
